<compile_context>
chip_gen: v5e
topology: v5e:2x2
jax: 0.10.0
libtpu: 0.0.40
codegen_flags: <defaults>
</compile_context>

<pallas_src>
import functools

import jax
import jax.numpy as jnp
from jax.experimental import pallas as pl
from jax.experimental.pallas import tpu as pltpu

H = 128                # padded hidden width (50 / 100 -> 128, lane aligned)
DEFAULT_BLOCK_B = 512  # batch rows per grid step (multiple of 128)


def _round_up(n, m):
    return (n + m - 1) // m * m


def _mlp_kernel(x_ref, w16_ref, w_ref, b_ref, o_ref):
    # x_ref:   (TB, 1)    f32  scalar input feature per row
    # w16_ref: (2, H)     f32  row 0 = fc1 weight row (1->H), row 1 = fc6 column (H->1)
    # w_ref:   (4, H, H)  bf16 fc2..fc5 padded weights, stored (in, out)
    # b_ref:   (6, H)     f32  padded biases; fc6 bias sits in lane 0 of row 5
    # o_ref:   (1, 1, TB) f32  compact lane-dense output row for this tile
    x = x_ref[...]                                   # (TB, 1)
    w16 = w16_ref[...]                               # (2, H)
    b = b_ref[...]                                   # (6, H)

    # fc1: contraction dim is 1 -> pure VPU broadcast in f32, skip the MXU.
    h = jnp.maximum(x * w16[0:1, :] + b[0:1, :], 0.0)          # (TB, H) f32

    # fc2..fc5: bf16 operands, f32 accumulation -> clean 128-aligned MXU tiles.
    for i in range(4):
        z = jnp.dot(h.astype(jnp.bfloat16), w_ref[i],
                    preferred_element_type=jnp.float32)         # (TB, H) f32
        h = jnp.maximum(z + b[i + 1:i + 2, :], 0.0)

    # fc6 (output width 1) fused with the sublane->lane relayout: contract the
    # last dims on the MXU so the batch dim lands in lanes:
    #   rows[r, m] = sum_k w6[k] * h[m, k]
    # (w6 broadcast to 8 sublanes to keep a native-sized MXU operand; only
    #  row 0 of the result is used.)
    w6 = jnp.broadcast_to(w16[1:2, :], (8, H)).astype(jnp.bfloat16)
    rows = jax.lax.dot_general(
        w6, h.astype(jnp.bfloat16),
        dimension_numbers=(((1,), (1,)), ((), ())),
        preferred_element_type=jnp.float32)                      # (8, TB)
    o_ref[...] = (rows[0:1, :] + b[5:6, 0:1]).reshape(o_ref.shape)


def pack_params(params):
    """Pad hidden dims to 128 and pack 13 operands into 3 arrays (done once)."""
    (w1, b1), (w2, b2), (w3, b3), (w4, b4), (w5, b5), (w6, b6) = params

    def pad_vec(v):
        v = v.reshape(-1)
        return jnp.pad(v, (0, H - v.shape[0]))

    def pad_mat(w):
        return jnp.pad(w, ((0, H - w.shape[0]), (0, H - w.shape[1])))

    w16 = jnp.stack([pad_vec(w1), pad_vec(w6)]).astype(jnp.float32)            # (2, H)
    w_stack = jnp.stack(
        [pad_mat(w) for w in (w2, w3, w4, w5)]).astype(jnp.bfloat16)           # (4, H, H)
    b_stack = jnp.stack(
        [pad_vec(v) for v in (b1, b2, b3, b4, b5, b6)]).astype(jnp.float32)    # (6, H)
    return w16, w_stack, b_stack


@functools.partial(jax.jit, static_argnames=("block_b",))
def regression_net_forward(x, w16, w_stack, b_stack, block_b=DEFAULT_BLOCK_B):
    """x: (B, 1) float32. Packed params from pack_params(). Returns (B, 1)."""
    B = x.shape[0]
    # Fixed batch tile (multiple of 128); pad B up instead of falling back to a
    # single full-batch block. Keeps the double-buffered VMEM footprint small
    # at any B and gives >=2 grid steps (megacore-shardable) for large B.
    tile = min(_round_up(block_b, 128), _round_up(B, 128))
    b_pad = _round_up(B, tile)
    num_blocks = b_pad // tile

    x_p = jnp.pad(x, ((0, b_pad - B), (0, 0))) if b_pad != B else x

    # Advisory cost for XLA scheduling around a small kernel.
    flops = 2 * b_pad * H * (2 + 4 * H)
    bytes_accessed = (4 * x_p.size + 4 * w16.size + 2 * w_stack.size
                      + 4 * b_stack.size + 4 * b_pad)

    out = pl.pallas_call(
        _mlp_kernel,
        out_shape=jax.ShapeDtypeStruct((num_blocks, 1, tile), jnp.float32),
        grid_spec=pltpu.PrefetchScalarGridSpec(
            num_scalar_prefetch=0,
            grid=(num_blocks,),
            in_specs=[
                pl.BlockSpec((tile, 1), lambda i: (i, 0)),
                # Constant-index blocks stay resident across grid steps.
                pl.BlockSpec((2, H), lambda i: (0, 0)),
                pl.BlockSpec((4, H, H), lambda i: (0, 0, 0)),
                pl.BlockSpec((6, H), lambda i: (0, 0)),
            ],
            out_specs=pl.BlockSpec((1, 1, tile), lambda i: (i, 0, 0)),
        ),
        compiler_params=pltpu.CompilerParams(
            dimension_semantics=("parallel",)),
        cost_estimate=pl.CostEstimate(
            flops=flops, bytes_accessed=bytes_accessed, transcendentals=0),
    )(x_p, w16, w_stack, b_stack)

    # (num_blocks, 1, tile) -> (B, 1): contiguous reshape + leading slice.
    return out.reshape(b_pad, 1)[:B]


def init_params(key):
    """Deterministic init matching nn.Linear shapes (stored as (in, out))."""
    dims = [(1, 50), (50, 100), (100, 100), (100, 100), (100, 100), (100, 1)]
    params = []
    for fan_in, fan_out in dims:
        kw, kb, key = jax.random.split(key, 3)
        bound = 1.0 / jnp.sqrt(jnp.float32(fan_in))
        w = jax.random.uniform(kw, (fan_in, fan_out), jnp.float32, -bound, bound)
        b = jax.random.uniform(kb, (1, fan_out), jnp.float32, -bound, bound)
        params.append((w, b))
    return params


def reference_forward(x, params, matmul_dtype=None):
    """Pure-JAX reference. matmul_dtype=bf16 mimics the kernel's mixed precision."""
    h = x
    for i, (w, b) in enumerate(params):
        if matmul_dtype is not None and i > 0:   # fc2..fc6 use the MXU in the kernel
            z = jnp.dot(h.astype(matmul_dtype), w.astype(matmul_dtype),
                        preferred_element_type=jnp.float32) + b
        else:
            z = h @ w + b
        h = jnp.maximum(z, 0.0) if i < len(params) - 1 else z
    return h


if __name__ == "__main__":
    key = jax.random.PRNGKey(0)
    kx, kp = jax.random.split(key)

    B = 8  # small batch of scalar regression inputs, matching Linear(1, 50)
    x = jax.random.normal(kx, (B, 1), jnp.float32)
    params = init_params(kp)
    packed = pack_params(params)  # pad + pack + bf16-cast once, not per call

    out = regression_net_forward(x, *packed)
    out = jax.block_until_ready(out)
    assert out.shape == (B, 1)

    ref_mixed = reference_forward(x, params, matmul_dtype=jnp.bfloat16)
    ref_f32 = reference_forward(x, params)
    assert jnp.allclose(out, ref_mixed, atol=1e-2, rtol=1e-2), \
        "mismatch vs mixed-precision reference"
    assert jnp.allclose(out, ref_f32, atol=5e-2, rtol=5e-2), \
        "mismatch vs f32 reference"

    print("KERNEL_OK")
</pallas_src>

<mosaic_0001>
module attributes {stable_mosaic.version = 11 : i64} {
  func.func @_mlp_kernel(%arg0: i32, %arg1: memref<128x1xf32, #tpu.memory_space<vmem>>, %arg2: memref<2x128xf32, #tpu.memory_space<vmem>>, %arg3: memref<4x128x128xbf16, #tpu.memory_space<vmem>>, %arg4: memref<6x128xf32, #tpu.memory_space<vmem>>, %arg5: memref<1x1x128xf32, #tpu.memory_space<vmem>>) attributes {dimension_semantics = [#tpu.dimension_semantics<parallel>], iteration_bounds = array<i64: 1>, scalar_prefetch = 0 : i64, scratch_operands = 0 : i64, tpu.core_type = #tpu.core_type<tc>, window_params = [{transform_indices = @transform_0, window_bounds = array<i64: 128, 1>}, {pipeline_mode = #tpu.pipeline_mode<synchronous>, transform_indices = @transform_1, window_bounds = array<i64: 2, 128>}, {pipeline_mode = #tpu.pipeline_mode<synchronous>, transform_indices = @transform_2, window_bounds = array<i64: 4, 128, 128>}, {pipeline_mode = #tpu.pipeline_mode<synchronous>, transform_indices = @transform_3, window_bounds = array<i64: 6, 128>}, {transform_indices = @transform_4, window_bounds = array<i64: 1, 1, 128>}]} {
    %c0 = arith.constant 0 : index
    %c0_0 = arith.constant 0 : index
    %0 = vector.load %arg1[%c0, %c0_0] : memref<128x1xf32, #tpu.memory_space<vmem>>, vector<128x1xf32>
    %c0_1 = arith.constant 0 : index
    %c0_2 = arith.constant 0 : index
    %1 = vector.load %arg2[%c0_1, %c0_2] : memref<2x128xf32, #tpu.memory_space<vmem>>, vector<2x128xf32>
    %c0_3 = arith.constant 0 : index
    %c0_4 = arith.constant 0 : index
    %2 = vector.load %arg4[%c0_3, %c0_4] : memref<6x128xf32, #tpu.memory_space<vmem>>, vector<6x128xf32>
    %3 = vector.extract_strided_slice %1 {offsets = [0, 0], sizes = [1, 128], strides = [1, 1]} : vector<2x128xf32> to vector<1x128xf32>
    %4 = vector.broadcast %0 : vector<128x1xf32> to vector<128x128xf32>
    %5 = vector.broadcast %3 : vector<1x128xf32> to vector<128x128xf32>
    %6 = arith.mulf %4, %5 : vector<128x128xf32>
    %7 = vector.extract_strided_slice %2 {offsets = [0, 0], sizes = [1, 128], strides = [1, 1]} : vector<6x128xf32> to vector<1x128xf32>
    %8 = vector.broadcast %7 : vector<1x128xf32> to vector<128x128xf32>
    %9 = arith.addf %6, %8 : vector<128x128xf32>
    %cst = arith.constant 0.000000e+00 : f32
    %10 = vector.broadcast %cst : f32 to vector<128x128xf32>
    %11 = arith.maximumf %9, %10 : vector<128x128xf32>
    %12 = arith.truncf %11 : vector<128x128xf32> to vector<128x128xbf16>
    %c0_5 = arith.constant 0 : index
    %c0_6 = arith.constant 0 : index
    %c0_7 = arith.constant 0 : index
    %13 = vector.load %arg3[%c0_5, %c0_6, %c0_7] : memref<4x128x128xbf16, #tpu.memory_space<vmem>>, vector<1x128x128xbf16>
    %14 = vector.shape_cast %13 : vector<1x128x128xbf16> to vector<128x128xbf16>
    %cst_8 = arith.constant dense<0.000000e+00> : vector<128x128xf32>
    %15 = tpu.matmul %12, %14, %cst_8 {dimension_numbers = #tpu.dot_dimension_numbers<[1], [0], [0], [1], [0, 0, 1, 1], [], []>} : vector<128x128xbf16>, vector<128x128xbf16>, vector<128x128xf32> -> vector<128x128xf32>
    %16 = vector.extract_strided_slice %2 {offsets = [1, 0], sizes = [1, 128], strides = [1, 1]} : vector<6x128xf32> to vector<1x128xf32>
    %17 = vector.broadcast %16 : vector<1x128xf32> to vector<128x128xf32>
    %18 = arith.addf %15, %17 : vector<128x128xf32>
    %cst_9 = arith.constant 0.000000e+00 : f32
    %19 = vector.broadcast %cst_9 : f32 to vector<128x128xf32>
    %20 = arith.maximumf %18, %19 : vector<128x128xf32>
    %21 = arith.truncf %20 : vector<128x128xf32> to vector<128x128xbf16>
    %c1 = arith.constant 1 : index
    %c0_10 = arith.constant 0 : index
    %c0_11 = arith.constant 0 : index
    %22 = vector.load %arg3[%c1, %c0_10, %c0_11] : memref<4x128x128xbf16, #tpu.memory_space<vmem>>, vector<1x128x128xbf16>
    %23 = vector.shape_cast %22 : vector<1x128x128xbf16> to vector<128x128xbf16>
    %cst_12 = arith.constant dense<0.000000e+00> : vector<128x128xf32>
    %24 = tpu.matmul %21, %23, %cst_12 {dimension_numbers = #tpu.dot_dimension_numbers<[1], [0], [0], [1], [0, 0, 1, 1], [], []>} : vector<128x128xbf16>, vector<128x128xbf16>, vector<128x128xf32> -> vector<128x128xf32>
    %25 = vector.extract_strided_slice %2 {offsets = [2, 0], sizes = [1, 128], strides = [1, 1]} : vector<6x128xf32> to vector<1x128xf32>
    %26 = vector.broadcast %25 : vector<1x128xf32> to vector<128x128xf32>
    %27 = arith.addf %24, %26 : vector<128x128xf32>
    %cst_13 = arith.constant 0.000000e+00 : f32
    %28 = vector.broadcast %cst_13 : f32 to vector<128x128xf32>
    %29 = arith.maximumf %27, %28 : vector<128x128xf32>
    %30 = arith.truncf %29 : vector<128x128xf32> to vector<128x128xbf16>
    %c2 = arith.constant 2 : index
    %c0_14 = arith.constant 0 : index
    %c0_15 = arith.constant 0 : index
    %31 = vector.load %arg3[%c2, %c0_14, %c0_15] : memref<4x128x128xbf16, #tpu.memory_space<vmem>>, vector<1x128x128xbf16>
    %32 = vector.shape_cast %31 : vector<1x128x128xbf16> to vector<128x128xbf16>
    %cst_16 = arith.constant dense<0.000000e+00> : vector<128x128xf32>
    %33 = tpu.matmul %30, %32, %cst_16 {dimension_numbers = #tpu.dot_dimension_numbers<[1], [0], [0], [1], [0, 0, 1, 1], [], []>} : vector<128x128xbf16>, vector<128x128xbf16>, vector<128x128xf32> -> vector<128x128xf32>
    %34 = vector.extract_strided_slice %2 {offsets = [3, 0], sizes = [1, 128], strides = [1, 1]} : vector<6x128xf32> to vector<1x128xf32>
    %35 = vector.broadcast %34 : vector<1x128xf32> to vector<128x128xf32>
    %36 = arith.addf %33, %35 : vector<128x128xf32>
    %cst_17 = arith.constant 0.000000e+00 : f32
    %37 = vector.broadcast %cst_17 : f32 to vector<128x128xf32>
    %38 = arith.maximumf %36, %37 : vector<128x128xf32>
    %39 = arith.truncf %38 : vector<128x128xf32> to vector<128x128xbf16>
    %c3 = arith.constant 3 : index
    %c0_18 = arith.constant 0 : index
    %c0_19 = arith.constant 0 : index
    %40 = vector.load %arg3[%c3, %c0_18, %c0_19] : memref<4x128x128xbf16, #tpu.memory_space<vmem>>, vector<1x128x128xbf16>
    %41 = vector.shape_cast %40 : vector<1x128x128xbf16> to vector<128x128xbf16>
    %cst_20 = arith.constant dense<0.000000e+00> : vector<128x128xf32>
    %42 = tpu.matmul %39, %41, %cst_20 {dimension_numbers = #tpu.dot_dimension_numbers<[1], [0], [0], [1], [0, 0, 1, 1], [], []>} : vector<128x128xbf16>, vector<128x128xbf16>, vector<128x128xf32> -> vector<128x128xf32>
    %43 = vector.extract_strided_slice %2 {offsets = [4, 0], sizes = [1, 128], strides = [1, 1]} : vector<6x128xf32> to vector<1x128xf32>
    %44 = vector.broadcast %43 : vector<1x128xf32> to vector<128x128xf32>
    %45 = arith.addf %42, %44 : vector<128x128xf32>
    %cst_21 = arith.constant 0.000000e+00 : f32
    %46 = vector.broadcast %cst_21 : f32 to vector<128x128xf32>
    %47 = arith.maximumf %45, %46 : vector<128x128xf32>
    %48 = vector.extract_strided_slice %1 {offsets = [1, 0], sizes = [1, 128], strides = [1, 1]} : vector<2x128xf32> to vector<1x128xf32>
    %49 = vector.shape_cast %48 : vector<1x128xf32> to vector<1x128xf32>
    %50 = vector.broadcast %49 : vector<1x128xf32> to vector<8x128xf32>
    %51 = arith.truncf %50 : vector<8x128xf32> to vector<8x128xbf16>
    %52 = arith.truncf %47 : vector<128x128xf32> to vector<128x128xbf16>
    %cst_22 = arith.constant dense<0.000000e+00> : vector<8x128xf32>
    %53 = tpu.matmul %51, %52, %cst_22 {dimension_numbers = #tpu.dot_dimension_numbers<[1], [1], [0], [0], [0, 0, 1, 0], [], []>} : vector<8x128xbf16>, vector<128x128xbf16>, vector<8x128xf32> -> vector<8x128xf32>
    %54 = vector.extract_strided_slice %53 {offsets = [0, 0], sizes = [1, 128], strides = [1, 1]} : vector<8x128xf32> to vector<1x128xf32>
    %55 = vector.extract_strided_slice %2 {offsets = [5, 0], sizes = [1, 1], strides = [1, 1]} : vector<6x128xf32> to vector<1x1xf32>
    %56 = vector.broadcast %55 : vector<1x1xf32> to vector<1x128xf32>
    %57 = arith.addf %54, %56 : vector<1x128xf32>
    %58 = vector.shape_cast %57 : vector<1x128xf32> to vector<1x1x128xf32>
    %c0_23 = arith.constant 0 : index
    %c0_24 = arith.constant 0 : index
    %c0_25 = arith.constant 0 : index
    %59 = vector.load %arg5[%c0_23, %c0_24, %c0_25] : memref<1x1x128xf32, #tpu.memory_space<vmem>>, vector<1x1x128xf32>
    tpu.vector_store %arg5[%c0_23, %c0_24, %c0_25], %58 {strides = array<i32>} : memref<1x1x128xf32, #tpu.memory_space<vmem>>, vector<1x1x128xf32>,
    return
  }
  func.func @transform_0(%arg0: i32) -> (i32, i32) {
    %c0_i32 = arith.constant 0 : i32
    %c0_i32_0 = arith.constant 0 : i32
    return %arg0, %c0_i32 : i32, i32
  }
  func.func @transform_1(%arg0: i32) -> (i32, i32) {
    %c0_i32 = arith.constant 0 : i32
    %c0_i32_0 = arith.constant 0 : i32
    %c0_i32_1 = arith.constant 0 : i32
    return %c0_i32, %c0_i32_0 : i32, i32
  }
  func.func @transform_2(%arg0: i32) -> (i32, i32, i32) {
    %c0_i32 = arith.constant 0 : i32
    %c0_i32_0 = arith.constant 0 : i32
    %c0_i32_1 = arith.constant 0 : i32
    %c0_i32_2 = arith.constant 0 : i32
    return %c0_i32, %c0_i32_0, %c0_i32_1 : i32, i32, i32
  }
  func.func @transform_3(%arg0: i32) -> (i32, i32) {
    %c0_i32 = arith.constant 0 : i32
    %c0_i32_0 = arith.constant 0 : i32
    %c0_i32_1 = arith.constant 0 : i32
    return %c0_i32, %c0_i32_0 : i32, i32
  }
  func.func @transform_4(%arg0: i32) -> (i32, i32, i32) {
    %c0_i32 = arith.constant 0 : i32
    %c0_i32_0 = arith.constant 0 : i32
    %c0_i32_1 = arith.constant 0 : i32
    return %arg0, %c0_i32, %c0_i32_0 : i32, i32, i32
  }
}

</mosaic_0001>

<llo_original>
// kernel: regression_net_forward.1
$region0: #{regression_net_forward.1}
  #allocation0 [shape = 'u32[]', space=smem, size = 0x4, offset = 0x4, fixed_abs, tag = 'smem constant byte address 0x4 - core index']
  #allocation1 [shape = 'u32[72,128]{1,0:T(1,128)}', space=vmem, size = 0x9000, scoped, tag = 'internal scratch']
  %s0 = inlined_call_operand.vmem [shape: f32[128,1], index: 0, kind: input, shape index: {}]
  %s1 = inlined_call_operand.vmem [shape: f32[2,128], index: 1, kind: input, shape index: {}]
  %s2 = inlined_call_operand.hbm [shape: bf16[4,128,128], index: 2, kind: input, shape index: {}]
  %s3 = inlined_call_operand.vmem [shape: f32[6,128], index: 3, kind: input, shape index: {}]
  %s4 = inlined_call_operand.vmem [shape: f32[1,1,128], index: 4, kind: output, shape index: {}]
  %s5 = sld [smem:[#allocation0]]
  $region30: #{regression_net_forward.1} parent=0
    _
  %s7 = ssub.s32 1, %s5
  %s8 = scalar_select 0, %s7, %s5
  $region1: #{regression_net_forward.1} parent=0
    #allocation2 [shape = 'u8[131072]{0}', space=vmem, size = 0x20000, scoped, tag = 'input window, operand 2, single buffered']
    #allocation3 [shape = 's32[1]{0}', space=sflag, size = 0x4, scoped, tag = 'scoped memory for regression_net_forward.1']
    %9 = vsyncpa [#allocation3], 0
    // Predicated region
    $region2: #{regression_net_forward.1} parent=1 // pred_check
      _
    $region3: #{regression_net_forward.1} parent=1 // pred_check_branch
      %11 = sbr.rel (0) target = $region5
    $region4: #{regression_net_forward.1} parent=1 // pred_region
      _
    $region5: #{regression_net_forward.1} parent=1 // pred_fallthru
      _
    // Predicated region
    $region6: #{regression_net_forward.1} parent=1 // pred_check
      _
    $region7: #{regression_net_forward.1} parent=1 // pred_check_branch
      %13 = sbr.rel (0) target = $region9
    $region8: #{regression_net_forward.1} parent=1 // pred_region
      _
    $region9: #{regression_net_forward.1} parent=1 // pred_fallthru
      _
    // Predicated region
    $region10: #{regression_net_forward.1} parent=1 // pred_check
      _
    $region11: #{regression_net_forward.1} parent=1 // pred_check_branch
      %15 = sbr.rel (0) target = $region13
    $region12: #{regression_net_forward.1} parent=1 // pred_region
      %17 = vsyncadd [#allocation3], 0
      %s18 = sshll.u32 %s2, 4
      %s19 = int_to_ptr.hbm [resolvable:$true] %s18
      %s20 = sshll.u32 [#allocation2], 4
      %s21 = int_to_ptr.vmem [resolvable:$true] %s20
      %26 = dma.hbm_to_vmem [thread:$0]  %s19, 4096, %s21, [#allocation3], 64, 64, 4
    $region13: #{regression_net_forward.1} parent=1 // pred_fallthru
      _
    // Predicated region
    $region14: #{regression_net_forward.1} parent=1 // pred_check
      _
    $region15: #{regression_net_forward.1} parent=1 // pred_check_branch
      %28 = sbr.rel (0) target = $region17
    $region16: #{regression_net_forward.1} parent=1 // pred_region
      _
    $region17: #{regression_net_forward.1} parent=1 // pred_fallthru
      _
    // Predicated region
    $region18: #{regression_net_forward.1} parent=1 // pred_check
      _
    $region19: #{regression_net_forward.1} parent=1 // pred_check_branch
      %30 = sbr.rel (0) target = $region21
    $region20: #{regression_net_forward.1} parent=1 // pred_region
      %32 = dma.done [#allocation3], 4096
    $region21: #{regression_net_forward.1} parent=1 // pred_fallthru
      _
    %v33 = vld [vmem:[%s0] sm:$0xff]
    %v34 = vld [vmem:[%s0 + $0x8] sm:$0xff]
    %v35 = vld [vmem:[%s0 + $0x10] sm:$0xff]
    %v36 = vld [vmem:[%s0 + $0x18] sm:$0xff]
    %v37 = vld [vmem:[%s0 + $0x20] sm:$0xff]
    %v38 = vld [vmem:[%s0 + $0x28] sm:$0xff]
    %v39 = vld [vmem:[%s0 + $0x30] sm:$0xff]
    %v40 = vld [vmem:[%s0 + $0x38] sm:$0xff]
    %v41 = vld [vmem:[%s0 + $0x40] sm:$0xff]
    %v42 = vld [vmem:[%s0 + $0x48] sm:$0xff]
    %v43 = vld [vmem:[%s0 + $0x50] sm:$0xff]
    %v44 = vld [vmem:[%s0 + $0x58] sm:$0xff]
    %v45 = vld [vmem:[%s0 + $0x60] sm:$0xff]
    %v46 = vld [vmem:[%s0 + $0x68] sm:$0xff]
    %v47 = vld [vmem:[%s0 + $0x70] sm:$0xff]
    %v48 = vld [vmem:[%s0 + $0x78] sm:$0xff]
    %v49 = vld [vmem:[%s1] sm:$0x3]
    %v50 = vld [vmem:[%s3] sm:$0x3f]
    %52 = vset.pattern.permute.xlu0 0
    %53 = vperm.xlu0 %52, %v33
    %v54 = vpop.permute.xlu0 %53
    %57 = vset.pattern.permute.xlu0 0
    %58 = vperm.xlu0 %57, %v34
    %v59 = vpop.permute.xlu0 %58
    %62 = vset.pattern.permute.xlu0 0
    %63 = vperm.xlu0 %62, %v35
    %v64 = vpop.permute.xlu0 %63
    %67 = vset.pattern.permute.xlu0 0
    %68 = vperm.xlu0 %67, %v36
    %v69 = vpop.permute.xlu0 %68
    %72 = vset.pattern.permute.xlu0 0
    %73 = vperm.xlu0 %72, %v37
    %v74 = vpop.permute.xlu0 %73
    %77 = vset.pattern.permute.xlu0 0
    %78 = vperm.xlu0 %77, %v38
    %v79 = vpop.permute.xlu0 %78
    %82 = vset.pattern.permute.xlu0 0
    %83 = vperm.xlu0 %82, %v39
    %v84 = vpop.permute.xlu0 %83
    %87 = vset.pattern.permute.xlu0 0
    %88 = vperm.xlu0 %87, %v40
    %v89 = vpop.permute.xlu0 %88
    %92 = vset.pattern.permute.xlu0 0
    %93 = vperm.xlu0 %92, %v41
    %v94 = vpop.permute.xlu0 %93
    %97 = vset.pattern.permute.xlu0 0
    %98 = vperm.xlu0 %97, %v42
    %v99 = vpop.permute.xlu0 %98
    %102 = vset.pattern.permute.xlu0 0
    %103 = vperm.xlu0 %102, %v43
    %v104 = vpop.permute.xlu0 %103
    %107 = vset.pattern.permute.xlu0 0
    %108 = vperm.xlu0 %107, %v44
    %v109 = vpop.permute.xlu0 %108
    %112 = vset.pattern.permute.xlu0 0
    %113 = vperm.xlu0 %112, %v45
    %v114 = vpop.permute.xlu0 %113
    %117 = vset.pattern.permute.xlu0 0
    %118 = vperm.xlu0 %117, %v46
    %v119 = vpop.permute.xlu0 %118
    %122 = vset.pattern.permute.xlu0 0
    %123 = vperm.xlu0 %122, %v47
    %v124 = vpop.permute.xlu0 %123
    %127 = vset.pattern.permute.xlu0 0
    %128 = vperm.xlu0 %127, %v48
    %v129 = vpop.permute.xlu0 %128
    %v131 = vperm.slane %v49, 0
    %v132 = vmul.f32 %v54, %v131
    %v133 = vmul.f32 %v59, %v131
    %v134 = vmul.f32 %v64, %v131
    %v135 = vmul.f32 %v69, %v131
    %v136 = vmul.f32 %v74, %v131
    %v137 = vmul.f32 %v79, %v131
    %v138 = vmul.f32 %v84, %v131
    %v139 = vmul.f32 %v89, %v131
    %v140 = vmul.f32 %v94, %v131
    %v141 = vmul.f32 %v99, %v131
    %v142 = vmul.f32 %v104, %v131
    %v143 = vmul.f32 %v109, %v131
    %v144 = vmul.f32 %v114, %v131
    %v145 = vmul.f32 %v119, %v131
    %v146 = vmul.f32 %v124, %v131
    %v147 = vmul.f32 %v129, %v131
    %v148 = vperm.slane %v50, 0
    %v149 = vadd.f32 %v132, %v148
    %v150 = vadd.f32 %v133, %v148
    %v151 = vadd.f32 %v134, %v148
    %v152 = vadd.f32 %v135, %v148
    %v153 = vadd.f32 %v136, %v148
    %v154 = vadd.f32 %v137, %v148
    %v155 = vadd.f32 %v138, %v148
    %v156 = vadd.f32 %v139, %v148
    %v157 = vadd.f32 %v140, %v148
    %v158 = vadd.f32 %v141, %v148
    %v159 = vadd.f32 %v142, %v148
    %v160 = vadd.f32 %v143, %v148
    %v161 = vadd.f32 %v144, %v148
    %v162 = vadd.f32 %v145, %v148
    %v163 = vadd.f32 %v146, %v148
    %v164 = vadd.f32 %v147, %v148
    %v165 = vmax.f32 %v149, 0.0
    %v166 = vmax.f32 %v150, 0.0
    %v167 = vmax.f32 %v151, 0.0
    %v168 = vmax.f32 %v152, 0.0
    %v169 = vmax.f32 %v153, 0.0
    %v170 = vmax.f32 %v154, 0.0
    %v171 = vmax.f32 %v155, 0.0
    %v172 = vmax.f32 %v156, 0.0
    %v173 = vmax.f32 %v157, 0.0
    %v174 = vmax.f32 %v158, 0.0
    %v175 = vmax.f32 %v159, 0.0
    %v176 = vmax.f32 %v160, 0.0
    %v177 = vmax.f32 %v161, 0.0
    %v178 = vmax.f32 %v162, 0.0
    %v179 = vmax.f32 %v163, 0.0
    %v180 = vmax.f32 %v164, 0.0
    %v181 = vpack.c.bf16 %v166, %v165
    %v182 = vpack.c.bf16 %v168, %v167
    %v183 = vpack.c.bf16 %v170, %v169
    %v184 = vpack.c.bf16 %v172, %v171
    %v185 = vpack.c.bf16 %v174, %v173
    %v186 = vpack.c.bf16 %v176, %v175
    %v187 = vpack.c.bf16 %v178, %v177
    %v188 = vpack.c.bf16 %v180, %v179
    %v189 = vld [vmem:[#allocation2] sm:$0xf]
    %v190 = vld [vmem:[#allocation2 + $0x4] sm:$0xf]
    %v191 = vld [vmem:[#allocation2 + $0x8] sm:$0xf]
    %v192 = vld [vmem:[#allocation2 + $0xc] sm:$0xf]
    %v193 = vld [vmem:[#allocation2 + $0x10] sm:$0xf]
    %v194 = vld [vmem:[#allocation2 + $0x14] sm:$0xf]
    %v195 = vld [vmem:[#allocation2 + $0x18] sm:$0xf]
    %v196 = vld [vmem:[#allocation2 + $0x1c] sm:$0xf]
    %v197 = vld [vmem:[#allocation2 + $0x20] sm:$0xf]
    %v198 = vld [vmem:[#allocation2 + $0x24] sm:$0xf]
    %v199 = vld [vmem:[#allocation2 + $0x28] sm:$0xf]
    %v200 = vld [vmem:[#allocation2 + $0x2c] sm:$0xf]
    %v201 = vld [vmem:[#allocation2 + $0x30] sm:$0xf]
    %v202 = vld [vmem:[#allocation2 + $0x34] sm:$0xf]
    %v203 = vld [vmem:[#allocation2 + $0x38] sm:$0xf]
    %v204 = vld [vmem:[#allocation2 + $0x3c] sm:$0xf]
    %v205 = vperm.slane %v50, 1
    %v222 = vunpack.c.l.b16 %v189
    %v223 = vunpack.c.l.b16 %v190
    %v224 = vunpack.c.l.b16 %v191
    %v225 = vunpack.c.l.b16 %v192
    %v226 = vunpack.c.l.b16 %v193
    %v227 = vunpack.c.l.b16 %v194
    %v228 = vunpack.c.l.b16 %v195
    %v229 = vunpack.c.l.b16 %v196
    %v230 = vunpack.c.l.b16 %v197
    %v231 = vunpack.c.l.b16 %v198
    %v232 = vunpack.c.l.b16 %v199
    %v233 = vunpack.c.l.b16 %v200
    %v234 = vunpack.c.l.b16 %v201
    %v235 = vunpack.c.l.b16 %v202
    %v236 = vunpack.c.l.b16 %v203
    %v237 = vunpack.c.l.b16 %v204
    %v238 = vpack.c.b16 %v223, %v222
    %v239 = vpack.c.b16 %v225, %v224
    %v240 = vpack.c.b16 %v227, %v226
    %v241 = vpack.c.b16 %v229, %v228
    %v242 = vpack.c.b16 %v231, %v230
    %v243 = vpack.c.b16 %v233, %v232
    %v244 = vpack.c.b16 %v235, %v234
    %v245 = vpack.c.b16 %v237, %v236
    %254 = vmatpush.bf16.msra.mxu0 %v245
    %255 = vmatpush.bf16.msra.mxu0 %v244
    %256 = vmatpush.bf16.msra.mxu0 %v243
    %257 = vmatpush.bf16.msra.mxu0 %v242
    %258 = vmatpush.bf16.msra.mxu0 %v241
    %259 = vmatpush.bf16.msra.mxu0 %v240
    %260 = vmatpush.bf16.msra.mxu0 %v239
    %261 = vmatpush.bf16.msra.mxu0 %v238
    %262 = vmatmul.bf16.gmra.mxu0 %v181
    %v263 = vpop.f32.mrf.mxu0
    %v264 = vadd.f32 %v205, %v263
    %v265 = vpop.f32.mrf.mxu0
    %v266 = vadd.f32 %v205, %v265
    %267 = vmatmul.bf16.gmra.mxu0 %v182
    %v268 = vpop.f32.mrf.mxu0
    %v269 = vadd.f32 %v205, %v268
    %v270 = vpop.f32.mrf.mxu0
    %v271 = vadd.f32 %v205, %v270
    %272 = vmatmul.bf16.gmra.mxu0 %v183
    %v273 = vpop.f32.mrf.mxu0
    %v274 = vadd.f32 %v205, %v273
    %v275 = vpop.f32.mrf.mxu0
    %v276 = vadd.f32 %v205, %v275
    %277 = vmatmul.bf16.gmra.mxu0 %v184
    %v278 = vpop.f32.mrf.mxu0
    %v279 = vadd.f32 %v205, %v278
    %v280 = vpop.f32.mrf.mxu0
    %v281 = vadd.f32 %v205, %v280
    %282 = vmatmul.bf16.gmra.mxu0 %v185
    %v283 = vpop.f32.mrf.mxu0
    %v284 = vadd.f32 %v205, %v283
    %v285 = vpop.f32.mrf.mxu0
    %v286 = vadd.f32 %v205, %v285
    %287 = vmatmul.bf16.gmra.mxu0 %v186
    %v288 = vpop.f32.mrf.mxu0
    %v289 = vadd.f32 %v205, %v288
    %v290 = vpop.f32.mrf.mxu0
    %v291 = vadd.f32 %v205, %v290
    %292 = vmatmul.bf16.gmra.mxu0 %v187
    %v293 = vpop.f32.mrf.mxu0
    %v294 = vadd.f32 %v205, %v293
    %v295 = vpop.f32.mrf.mxu0
    %v296 = vadd.f32 %v205, %v295
    %297 = vmatmul.bf16.gmra.mxu0 %v188
    %v298 = vpop.f32.mrf.mxu0
    %v299 = vadd.f32 %v205, %v298
    %v300 = vpop.f32.mrf.mxu0
    %v301 = vadd.f32 %v205, %v300
    %302 = vdwg.mxu0
    %v303 = vmax.f32 %v264, 0.0
    %v304 = vmax.f32 %v266, 0.0
    %v305 = vmax.f32 %v269, 0.0
    %v306 = vmax.f32 %v271, 0.0
    %v307 = vmax.f32 %v274, 0.0
    %v308 = vmax.f32 %v276, 0.0
    %v309 = vmax.f32 %v279, 0.0
    %v310 = vmax.f32 %v281, 0.0
    %v311 = vmax.f32 %v284, 0.0
    %v312 = vmax.f32 %v286, 0.0
    %v313 = vmax.f32 %v289, 0.0
    %v314 = vmax.f32 %v291, 0.0
    %v315 = vmax.f32 %v294, 0.0
    %v316 = vmax.f32 %v296, 0.0
    %v317 = vmax.f32 %v299, 0.0
    %v318 = vmax.f32 %v301, 0.0
    %v319 = vpack.c.bf16 %v304, %v303
    %v320 = vpack.c.bf16 %v306, %v305
    %v321 = vpack.c.bf16 %v308, %v307
    %v322 = vpack.c.bf16 %v310, %v309
    %v323 = vpack.c.bf16 %v312, %v311
    %v324 = vpack.c.bf16 %v314, %v313
    %v325 = vpack.c.bf16 %v316, %v315
    %v326 = vpack.c.bf16 %v318, %v317
    %s327 = scalar_lea.vmem [#allocation2], 64
    %v328 = vld [vmem:[%s327] sm:$0xf]
    %v329 = vld [vmem:[%s327 + $0x4] sm:$0xf]
    %v330 = vld [vmem:[%s327 + $0x8] sm:$0xf]
    %v331 = vld [vmem:[%s327 + $0xc] sm:$0xf]
    %v332 = vld [vmem:[%s327 + $0x10] sm:$0xf]
    %v333 = vld [vmem:[%s327 + $0x14] sm:$0xf]
    %v334 = vld [vmem:[%s327 + $0x18] sm:$0xf]
    %v335 = vld [vmem:[%s327 + $0x1c] sm:$0xf]
    %v336 = vld [vmem:[%s327 + $0x20] sm:$0xf]
    %v337 = vld [vmem:[%s327 + $0x24] sm:$0xf]
    %v338 = vld [vmem:[%s327 + $0x28] sm:$0xf]
    %v339 = vld [vmem:[%s327 + $0x2c] sm:$0xf]
    %v340 = vld [vmem:[%s327 + $0x30] sm:$0xf]
    %v341 = vld [vmem:[%s327 + $0x34] sm:$0xf]
    %v342 = vld [vmem:[%s327 + $0x38] sm:$0xf]
    %v343 = vld [vmem:[%s327 + $0x3c] sm:$0xf]
    %v344 = vperm.slane %v50, 2
    %v361 = vunpack.c.l.b16 %v328
    %v362 = vunpack.c.l.b16 %v329
    %v363 = vunpack.c.l.b16 %v330
    %v364 = vunpack.c.l.b16 %v331
    %v365 = vunpack.c.l.b16 %v332
    %v366 = vunpack.c.l.b16 %v333
    %v367 = vunpack.c.l.b16 %v334
    %v368 = vunpack.c.l.b16 %v335
    %v369 = vunpack.c.l.b16 %v336
    %v370 = vunpack.c.l.b16 %v337
    %v371 = vunpack.c.l.b16 %v338
    %v372 = vunpack.c.l.b16 %v339
    %v373 = vunpack.c.l.b16 %v340
    %v374 = vunpack.c.l.b16 %v341
    %v375 = vunpack.c.l.b16 %v342
    %v376 = vunpack.c.l.b16 %v343
    %v377 = vpack.c.b16 %v362, %v361
    %v378 = vpack.c.b16 %v364, %v363
    %v379 = vpack.c.b16 %v366, %v365
    %v380 = vpack.c.b16 %v368, %v367
    %v381 = vpack.c.b16 %v370, %v369
    %v382 = vpack.c.b16 %v372, %v371
    %v383 = vpack.c.b16 %v374, %v373
    %v384 = vpack.c.b16 %v376, %v375
    %393 = vmatpush.bf16.msra.mxu0 %v384
    %394 = vmatpush.bf16.msra.mxu0 %v383
    %395 = vmatpush.bf16.msra.mxu0 %v382
    %396 = vmatpush.bf16.msra.mxu0 %v381
    %397 = vmatpush.bf16.msra.mxu0 %v380
    %398 = vmatpush.bf16.msra.mxu0 %v379
    %399 = vmatpush.bf16.msra.mxu0 %v378
    %400 = vmatpush.bf16.msra.mxu0 %v377
    %401 = vmatmul.bf16.gmra.mxu0 %v319
    %v402 = vpop.f32.mrf.mxu0
    %v403 = vadd.f32 %v344, %v402
    %v404 = vpop.f32.mrf.mxu0
    %v405 = vadd.f32 %v344, %v404
    %406 = vmatmul.bf16.gmra.mxu0 %v320
    %v407 = vpop.f32.mrf.mxu0
    %v408 = vadd.f32 %v344, %v407
    %v409 = vpop.f32.mrf.mxu0
    %v410 = vadd.f32 %v344, %v409
    %411 = vmatmul.bf16.gmra.mxu0 %v321
    %v412 = vpop.f32.mrf.mxu0
    %v413 = vadd.f32 %v344, %v412
    %v414 = vpop.f32.mrf.mxu0
    %v415 = vadd.f32 %v344, %v414
    %416 = vmatmul.bf16.gmra.mxu0 %v322
    %v417 = vpop.f32.mrf.mxu0
    %v418 = vadd.f32 %v344, %v417
    %v419 = vpop.f32.mrf.mxu0
    %v420 = vadd.f32 %v344, %v419
    %421 = vmatmul.bf16.gmra.mxu0 %v323
    %v422 = vpop.f32.mrf.mxu0
    %v423 = vadd.f32 %v344, %v422
    %v424 = vpop.f32.mrf.mxu0
    %v425 = vadd.f32 %v344, %v424
    %426 = vmatmul.bf16.gmra.mxu0 %v324
    %v427 = vpop.f32.mrf.mxu0
    %v428 = vadd.f32 %v344, %v427
    %v429 = vpop.f32.mrf.mxu0
    %v430 = vadd.f32 %v344, %v429
    %431 = vmatmul.bf16.gmra.mxu0 %v325
    %v432 = vpop.f32.mrf.mxu0
    %v433 = vadd.f32 %v344, %v432
    %v434 = vpop.f32.mrf.mxu0
    %v435 = vadd.f32 %v344, %v434
    %436 = vmatmul.bf16.gmra.mxu0 %v326
    %v437 = vpop.f32.mrf.mxu0
    %v438 = vadd.f32 %v344, %v437
    %v439 = vpop.f32.mrf.mxu0
    %v440 = vadd.f32 %v344, %v439
    %441 = vdwg.mxu0
    %v442 = vmax.f32 %v403, 0.0
    %v443 = vmax.f32 %v405, 0.0
    %v444 = vmax.f32 %v408, 0.0
    %v445 = vmax.f32 %v410, 0.0
    %v446 = vmax.f32 %v413, 0.0
    %v447 = vmax.f32 %v415, 0.0
    %v448 = vmax.f32 %v418, 0.0
    %v449 = vmax.f32 %v420, 0.0
    %v450 = vmax.f32 %v423, 0.0
    %v451 = vmax.f32 %v425, 0.0
    %v452 = vmax.f32 %v428, 0.0
    %v453 = vmax.f32 %v430, 0.0
    %v454 = vmax.f32 %v433, 0.0
    %v455 = vmax.f32 %v435, 0.0
    %v456 = vmax.f32 %v438, 0.0
    %v457 = vmax.f32 %v440, 0.0
    %v458 = vpack.c.bf16 %v443, %v442
    %v459 = vpack.c.bf16 %v445, %v444
    %v460 = vpack.c.bf16 %v447, %v446
    %v461 = vpack.c.bf16 %v449, %v448
    %v462 = vpack.c.bf16 %v451, %v450
    %v463 = vpack.c.bf16 %v453, %v452
    %v464 = vpack.c.bf16 %v455, %v454
    %v465 = vpack.c.bf16 %v457, %v456
    %s466 = scalar_lea.vmem [#allocation2], 128
    %v467 = vld [vmem:[%s466] sm:$0xf]
    %v468 = vld [vmem:[%s466 + $0x4] sm:$0xf]
    %v469 = vld [vmem:[%s466 + $0x8] sm:$0xf]
    %v470 = vld [vmem:[%s466 + $0xc] sm:$0xf]
    %v471 = vld [vmem:[%s466 + $0x10] sm:$0xf]
    %v472 = vld [vmem:[%s466 + $0x14] sm:$0xf]
    %v473 = vld [vmem:[%s466 + $0x18] sm:$0xf]
    %v474 = vld [vmem:[%s466 + $0x1c] sm:$0xf]
    %v475 = vld [vmem:[%s466 + $0x20] sm:$0xf]
    %v476 = vld [vmem:[%s466 + $0x24] sm:$0xf]
    %v477 = vld [vmem:[%s466 + $0x28] sm:$0xf]
    %v478 = vld [vmem:[%s466 + $0x2c] sm:$0xf]
    %v479 = vld [vmem:[%s466 + $0x30] sm:$0xf]
    %v480 = vld [vmem:[%s466 + $0x34] sm:$0xf]
    %v481 = vld [vmem:[%s466 + $0x38] sm:$0xf]
    %v482 = vld [vmem:[%s466 + $0x3c] sm:$0xf]
    %v483 = vperm.slane %v50, 3
    %v500 = vunpack.c.l.b16 %v467
    %v501 = vunpack.c.l.b16 %v468
    %v502 = vunpack.c.l.b16 %v469
    %v503 = vunpack.c.l.b16 %v470
    %v504 = vunpack.c.l.b16 %v471
    %v505 = vunpack.c.l.b16 %v472
    %v506 = vunpack.c.l.b16 %v473
    %v507 = vunpack.c.l.b16 %v474
    %v508 = vunpack.c.l.b16 %v475
    %v509 = vunpack.c.l.b16 %v476
    %v510 = vunpack.c.l.b16 %v477
    %v511 = vunpack.c.l.b16 %v478
    %v512 = vunpack.c.l.b16 %v479
    %v513 = vunpack.c.l.b16 %v480
    %v514 = vunpack.c.l.b16 %v481
    %v515 = vunpack.c.l.b16 %v482
    %v516 = vpack.c.b16 %v501, %v500
    %v517 = vpack.c.b16 %v503, %v502
    %v518 = vpack.c.b16 %v505, %v504
    %v519 = vpack.c.b16 %v507, %v506
    %v520 = vpack.c.b16 %v509, %v508
    %v521 = vpack.c.b16 %v511, %v510
    %v522 = vpack.c.b16 %v513, %v512
    %v523 = vpack.c.b16 %v515, %v514
    %532 = vmatpush.bf16.msra.mxu0 %v523
    %533 = vmatpush.bf16.msra.mxu0 %v522
    %534 = vmatpush.bf16.msra.mxu0 %v521
    %535 = vmatpush.bf16.msra.mxu0 %v520
    %536 = vmatpush.bf16.msra.mxu0 %v519
    %537 = vmatpush.bf16.msra.mxu0 %v518
    %538 = vmatpush.bf16.msra.mxu0 %v517
    %539 = vmatpush.bf16.msra.mxu0 %v516
    %540 = vmatmul.bf16.gmra.mxu0 %v458
    %v541 = vpop.f32.mrf.mxu0
    %v542 = vadd.f32 %v483, %v541
    %v543 = vpop.f32.mrf.mxu0
    %v544 = vadd.f32 %v483, %v543
    %545 = vmatmul.bf16.gmra.mxu0 %v459
    %v546 = vpop.f32.mrf.mxu0
    %v547 = vadd.f32 %v483, %v546
    %v548 = vpop.f32.mrf.mxu0
    %v549 = vadd.f32 %v483, %v548
    %550 = vmatmul.bf16.gmra.mxu0 %v460
    %v551 = vpop.f32.mrf.mxu0
    %v552 = vadd.f32 %v483, %v551
    %v553 = vpop.f32.mrf.mxu0
    %v554 = vadd.f32 %v483, %v553
    %555 = vmatmul.bf16.gmra.mxu0 %v461
    %v556 = vpop.f32.mrf.mxu0
    %v557 = vadd.f32 %v483, %v556
    %v558 = vpop.f32.mrf.mxu0
    %v559 = vadd.f32 %v483, %v558
    %560 = vmatmul.bf16.gmra.mxu0 %v462
    %v561 = vpop.f32.mrf.mxu0
    %v562 = vadd.f32 %v483, %v561
    %v563 = vpop.f32.mrf.mxu0
    %v564 = vadd.f32 %v483, %v563
    %565 = vmatmul.bf16.gmra.mxu0 %v463
    %v566 = vpop.f32.mrf.mxu0
    %v567 = vadd.f32 %v483, %v566
    %v568 = vpop.f32.mrf.mxu0
    %v569 = vadd.f32 %v483, %v568
    %570 = vmatmul.bf16.gmra.mxu0 %v464
    %v571 = vpop.f32.mrf.mxu0
    %v572 = vadd.f32 %v483, %v571
    %v573 = vpop.f32.mrf.mxu0
    %v574 = vadd.f32 %v483, %v573
    %575 = vmatmul.bf16.gmra.mxu0 %v465
    %v576 = vpop.f32.mrf.mxu0
    %v577 = vadd.f32 %v483, %v576
    %v578 = vpop.f32.mrf.mxu0
    %v579 = vadd.f32 %v483, %v578
    %580 = vdwg.mxu0
    %v581 = vmax.f32 %v542, 0.0
    %v582 = vmax.f32 %v544, 0.0
    %v583 = vmax.f32 %v547, 0.0
    %v584 = vmax.f32 %v549, 0.0
    %v585 = vmax.f32 %v552, 0.0
    %v586 = vmax.f32 %v554, 0.0
    %v587 = vmax.f32 %v557, 0.0
    %v588 = vmax.f32 %v559, 0.0
    %v589 = vmax.f32 %v562, 0.0
    %v590 = vmax.f32 %v564, 0.0
    %v591 = vmax.f32 %v567, 0.0
    %v592 = vmax.f32 %v569, 0.0
    %v593 = vmax.f32 %v572, 0.0
    %v594 = vmax.f32 %v574, 0.0
    %v595 = vmax.f32 %v577, 0.0
    %v596 = vmax.f32 %v579, 0.0
    %v597 = vpack.c.bf16 %v582, %v581
    %v598 = vpack.c.bf16 %v584, %v583
    %v599 = vpack.c.bf16 %v586, %v585
    %v600 = vpack.c.bf16 %v588, %v587
    %v601 = vpack.c.bf16 %v590, %v589
    %v602 = vpack.c.bf16 %v592, %v591
    %v603 = vpack.c.bf16 %v594, %v593
    %v604 = vpack.c.bf16 %v596, %v595
    %s605 = scalar_lea.vmem [#allocation2], 192
    %v606 = vld [vmem:[%s605] sm:$0xf]
    %v607 = vld [vmem:[%s605 + $0x4] sm:$0xf]
    %v608 = vld [vmem:[%s605 + $0x8] sm:$0xf]
    %v609 = vld [vmem:[%s605 + $0xc] sm:$0xf]
    %v610 = vld [vmem:[%s605 + $0x10] sm:$0xf]
    %v611 = vld [vmem:[%s605 + $0x14] sm:$0xf]
    %v612 = vld [vmem:[%s605 + $0x18] sm:$0xf]
    %v613 = vld [vmem:[%s605 + $0x1c] sm:$0xf]
    %v614 = vld [vmem:[%s605 + $0x20] sm:$0xf]
    %v615 = vld [vmem:[%s605 + $0x24] sm:$0xf]
    %v616 = vld [vmem:[%s605 + $0x28] sm:$0xf]
    %v617 = vld [vmem:[%s605 + $0x2c] sm:$0xf]
    %v618 = vld [vmem:[%s605 + $0x30] sm:$0xf]
    %v619 = vld [vmem:[%s605 + $0x34] sm:$0xf]
    %v620 = vld [vmem:[%s605 + $0x38] sm:$0xf]
    %v621 = vld [vmem:[%s605 + $0x3c] sm:$0xf]
    %v622 = vperm.slane %v50, 4
    %v639 = vunpack.c.l.b16 %v606
    %v640 = vunpack.c.l.b16 %v607
    %v641 = vunpack.c.l.b16 %v608
    %v642 = vunpack.c.l.b16 %v609
    %v643 = vunpack.c.l.b16 %v610
    %v644 = vunpack.c.l.b16 %v611
    %v645 = vunpack.c.l.b16 %v612
    %v646 = vunpack.c.l.b16 %v613
    %v647 = vunpack.c.l.b16 %v614
    %v648 = vunpack.c.l.b16 %v615
    %v649 = vunpack.c.l.b16 %v616
    %v650 = vunpack.c.l.b16 %v617
    %v651 = vunpack.c.l.b16 %v618
    %v652 = vunpack.c.l.b16 %v619
    %v653 = vunpack.c.l.b16 %v620
    %v654 = vunpack.c.l.b16 %v621
    %v655 = vpack.c.b16 %v640, %v639
    %v656 = vpack.c.b16 %v642, %v641
    %v657 = vpack.c.b16 %v644, %v643
    %v658 = vpack.c.b16 %v646, %v645
    %v659 = vpack.c.b16 %v648, %v647
    %v660 = vpack.c.b16 %v650, %v649
    %v661 = vpack.c.b16 %v652, %v651
    %v662 = vpack.c.b16 %v654, %v653
    %671 = vmatpush.bf16.msra.mxu0 %v662
    %672 = vmatpush.bf16.msra.mxu0 %v661
    %673 = vmatpush.bf16.msra.mxu0 %v660
    %674 = vmatpush.bf16.msra.mxu0 %v659
    %675 = vmatpush.bf16.msra.mxu0 %v658
    %676 = vmatpush.bf16.msra.mxu0 %v657
    %677 = vmatpush.bf16.msra.mxu0 %v656
    %678 = vmatpush.bf16.msra.mxu0 %v655
    %679 = vmatmul.bf16.gmra.mxu0 %v597
    %v680 = vpop.f32.mrf.mxu0
    %v681 = vadd.f32 %v622, %v680
    %v682 = vpop.f32.mrf.mxu0
    %v683 = vadd.f32 %v622, %v682
    %684 = vmatmul.bf16.gmra.mxu0 %v598
    %v685 = vpop.f32.mrf.mxu0
    %v686 = vadd.f32 %v622, %v685
    %v687 = vpop.f32.mrf.mxu0
    %v688 = vadd.f32 %v622, %v687
    %689 = vmatmul.bf16.gmra.mxu0 %v599
    %v690 = vpop.f32.mrf.mxu0
    %v691 = vadd.f32 %v622, %v690
    %v692 = vpop.f32.mrf.mxu0
    %v693 = vadd.f32 %v622, %v692
    %694 = vmatmul.bf16.gmra.mxu0 %v600
    %v695 = vpop.f32.mrf.mxu0
    %v696 = vadd.f32 %v622, %v695
    %v697 = vpop.f32.mrf.mxu0
    %v698 = vadd.f32 %v622, %v697
    %699 = vmatmul.bf16.gmra.mxu0 %v601
    %v700 = vpop.f32.mrf.mxu0
    %v701 = vadd.f32 %v622, %v700
    %v702 = vpop.f32.mrf.mxu0
    %v703 = vadd.f32 %v622, %v702
    %704 = vmatmul.bf16.gmra.mxu0 %v602
    %v705 = vpop.f32.mrf.mxu0
    %v706 = vadd.f32 %v622, %v705
    %v707 = vpop.f32.mrf.mxu0
    %v708 = vadd.f32 %v622, %v707
    %709 = vmatmul.bf16.gmra.mxu0 %v603
    %v710 = vpop.f32.mrf.mxu0
    %v711 = vadd.f32 %v622, %v710
    %v712 = vpop.f32.mrf.mxu0
    %v713 = vadd.f32 %v622, %v712
    %714 = vmatmul.bf16.gmra.mxu0 %v604
    %v715 = vpop.f32.mrf.mxu0
    %v716 = vadd.f32 %v622, %v715
    %v717 = vpop.f32.mrf.mxu0
    %v718 = vadd.f32 %v622, %v717
    %719 = vdwg.mxu0
    %v720 = vmax.f32 %v681, 0.0
    %v721 = vmax.f32 %v683, 0.0
    %v722 = vmax.f32 %v686, 0.0
    %v723 = vmax.f32 %v688, 0.0
    %v724 = vmax.f32 %v691, 0.0
    %v725 = vmax.f32 %v693, 0.0
    %v726 = vmax.f32 %v696, 0.0
    %v727 = vmax.f32 %v698, 0.0
    %v728 = vmax.f32 %v701, 0.0
    %v729 = vmax.f32 %v703, 0.0
    %v730 = vmax.f32 %v706, 0.0
    %v731 = vmax.f32 %v708, 0.0
    %v732 = vmax.f32 %v711, 0.0
    %v733 = vmax.f32 %v713, 0.0
    %v734 = vmax.f32 %v716, 0.0
    %v735 = vmax.f32 %v718, 0.0
    %v736 = vperm.slane %v49, 1
    %v737 = vpack.c.bf16 %v736, %v736
    %v738 = vpack.c.bf16 %v721, %v720
    %v739 = vpack.c.bf16 %v723, %v722
    %v740 = vpack.c.bf16 %v725, %v724
    %v741 = vpack.c.bf16 %v727, %v726
    %v742 = vpack.c.bf16 %v729, %v728
    %v743 = vpack.c.bf16 %v731, %v730
    %v744 = vpack.c.bf16 %v733, %v732
    %v745 = vpack.c.bf16 %v735, %v734
    %746 = vmatpush.bf16.xpose.msra.mxu0 %v745
    %747 = vmatpush.bf16.xpose.msra.mxu0 %v744
    %748 = vmatpush.bf16.xpose.msra.mxu0 %v743
    %749 = vmatpush.bf16.xpose.msra.mxu0 %v742
    %750 = vmatpush.bf16.xpose.msra.mxu0 %v741
    %751 = vmatpush.bf16.xpose.msra.mxu0 %v740
    %752 = vmatpush.bf16.xpose.msra.mxu0 %v739
    %753 = vmatpush.bf16.xpose.msra.mxu0 %v738
    %754 = vmatmul.bf16.gmra.mxu0 %v737
    %v755 = vpop.f32.mrf.mxu0
    %v756 = vadd.f32 0.0, %v755
    %v757 = vpop.f32.mrf.mxu0
    %758 = vdwg.mxu0
    %760 = vset.pattern.permute.xlu0 0
    %761 = vperm.xlu0 %760, %v50
    %v762 = vpop.permute.xlu0 %761
    %v763 = vrot.slane %v762, 5
    %v765 = vadd.f32 %v756, %v763
    %766 = vst [vmem:[%s4] sm:$0x1] %v765
    // Predicated region
    $region22: #{regression_net_forward.1} parent=1 // pred_check
      _
    $region23: #{regression_net_forward.1} parent=1 // pred_check_branch
      %768 = sbr.rel (0) target = $region25
    $region24: #{regression_net_forward.1} parent=1 // pred_region
      _
    $region25: #{regression_net_forward.1} parent=1 // pred_fallthru
      _
    // Predicated region
    $region26: #{regression_net_forward.1} parent=1 // pred_check
      _
    $region27: #{regression_net_forward.1} parent=1 // pred_check_branch
      %770 = sbr.rel (0) target = $region29
    $region28: #{regression_net_forward.1} parent=1 // pred_region
      _
    $region29: #{regression_net_forward.1} parent=1 // pred_fallthru
      _
    %771 = vsyncpa [#allocation3], 1

</llo_original>
